<compile_context>
chip_gen: v7x
topology: tpu7x:2x2x1
jax: 0.10.0
libtpu: 0.0.40
codegen_flags: <defaults>
</compile_context>

<pallas_src>
from functools import partial

import jax
import jax.numpy as jnp
from jax import lax
from jax.experimental import pallas as pl
from jax.experimental.pallas import tpu as pltpu


def _round_up(x, m):
    return (x + m - 1) // m * m


# ----------------------------- Pallas kernel -------------------------------- #
def _patch_conv_kernel(x_ref, w_ref, b_ref, o_ref):
    """Fused patchify + matmul + bias for one row tile.

    x_ref: (Rt, Kh, Ow, Kw*d)  input tile (rows = (batch, oh) pairs)
    w_ref: (Kh, Kw*d, Np)      full conv weight, resident in VMEM (fetched once)
    b_ref: (1, Np)             bias, zero-padded to Np lanes
    o_ref: (Rt*Ow, Np)         output rows for this tile (lane-dense, Np % 128 == 0)
    """
    Rt, Kh, Ow, Kd = x_ref.shape

    acc = None
    for kh in range(Kh):  # static, unrolled (Kh is small: the patch height)
        # (Rt, Ow, Kd) -> (Rt*Ow, Kd): layout-preserving collapse of leading dims.
        xk = x_ref[:, kh, :, :].reshape(Rt * Ow, Kd)
        t = jnp.dot(xk, w_ref[kh], preferred_element_type=jnp.float32)
        acc = t if acc is None else acc + t
    acc = acc + b_ref[...]  # (1, Np) broadcast over rows
    o_ref[...] = acc.astype(o_ref.dtype)


def _choose_row_tile(R, Kh, Ow, Kd, Np, budget_bytes):
    """Pick rows-per-tile (over the B*Oh axis) under an explicit VMEM budget."""
    per_row = 4 * (2 * Kh * Ow * Kd       # x block, double-buffered
                   + 2 * Ow * Np          # out block, double-buffered
                   + Ow * (Kd + Np))      # in-kernel temporaries (xk, acc)
    fixed = 4 * (2 * Kh * Kd * Np + 2 * Np)   # weight + bias
    max_rows = max(1, (budget_bytes - fixed) // per_row)
    target = max(8, 1024 // max(1, Ow))       # ~1k output rows per grid step
    rt = min(R, target, max_rows)
    if R >= 16:
        rt = min(rt, -(-R // 2))              # keep >= 2 grid tiles (megacore)
    if rt >= 8:
        rt -= rt % 8                          # sublane-aligned output blocks
    rt = max(1, rt)
    if rt != R and (rt * Ow) % 8 != 0:        # degenerate tiny-shape fallback
        rt = R
    return rt


def _fused_patch_conv(x4, w3, bias_p, R_tile):
    """x4: [R, Kh, Ow, Kw*d], w3: [Kh, Kw*d, Np], bias_p: [1, Np] -> [R*Ow, Np]."""
    R, Kh, Ow, Kd = x4.shape
    Np = w3.shape[-1]
    grid = (pl.cdiv(R, R_tile),)

    return pl.pallas_call(
        _patch_conv_kernel,
        out_shape=jax.ShapeDtypeStruct((R * Ow, Np), x4.dtype),
        grid_spec=pltpu.PrefetchScalarGridSpec(
            num_scalar_prefetch=0,
            grid=grid,
            in_specs=[
                pl.BlockSpec((R_tile, Kh, Ow, Kd), lambda i: (i, 0, 0, 0)),
                pl.BlockSpec((Kh, Kd, Np), lambda i: (0, 0, 0)),   # fetched once
                pl.BlockSpec((1, Np), lambda i: (0, 0)),
            ],
            out_specs=pl.BlockSpec((R_tile * Ow, Np), lambda i: (i, 0)),
        ),
        compiler_params=pltpu.CompilerParams(
            dimension_semantics=("parallel",),
            vmem_limit_bytes=40 * 2**20,
        ),
    )(x4, w3, bias_p)


# ------------------------------ JAX wrapper ---------------------------------- #
@partial(jax.jit, static_argnames=("input_grid", "output_grid", "ignore_dims"))
def patch_encoder_forward(x, weight, bias, *, input_grid, output_grid,
                          ignore_dims=()):
    """Forward pass of PatchEncoder.

    x:      [m, *grid, d]          (channels last)
    weight: [d_out, d_in, Kh, Kw]  (PyTorch nn.Conv2d layout)
    bias:   [d_out]
    """
    m = x.shape[0]
    d = x.shape[-1]
    grid_shape = x.shape[1:-1]
    n_grid = len(grid_shape)
    ignore_dims = tuple(dim + n_grid if dim < 0 else dim for dim in ignore_dims)
    conv_dims = tuple(i for i in range(n_grid) if i not in ignore_dims)
    assert len(conv_dims) == 2, "This kernel implements the 2D (Conv2d) case."
    # TODO(synk): 1D/3D (Conv1d/Conv3d) PatchEncoder variants are not implemented here.
    assert tuple(grid_shape[i] for i in conv_dims) == tuple(input_grid), \
        "Grid shape does not match input grid."

    # Merge ignore_dims into the batch (identity when ignore_dims is empty).
    perm = ((0,) + tuple(1 + i for i in ignore_dims)
            + tuple(1 + i for i in conv_dims) + (n_grid + 1,))
    xm = jnp.transpose(x, perm)
    merged_batch = m
    for i in ignore_dims:
        merged_batch *= grid_shape[i]
    H, W = (grid_shape[i] for i in conv_dims)
    xm = xm.reshape(merged_batch, H, W, d)

    Oh, Ow = output_grid
    Kh, Kw = H // Oh, W // Ow
    N = weight.shape[0]          # d_out (== embed_dim)
    Kd = Kw * d
    R = merged_batch * Oh

    # Free reshape: [(b, oh), kh, ow, (kw, d)].  The strided per-patch gather
    # (the transpose the previous version materialized in HBM) is now done by
    # the block DMA inside the kernel pipeline.
    x4 = xm.reshape(R, Kh, Ow, Kd)

    # Conv weight -> (Kh, Kw*d_in, d_out), matching the (kw, d) ordering of x4.
    w3 = jnp.transpose(weight, (2, 3, 1, 0)).reshape(Kh, Kd, N)

    # Pad output channels to a lane-dense multiple of 128.
    Np = _round_up(N, 128)
    if Np != N:
        w3 = jnp.pad(w3, ((0, 0), (0, 0), (0, Np - N)))
        bias_p = jnp.pad(bias, (0, Np - N)).reshape(1, Np)
    else:
        bias_p = bias.reshape(1, N)

    R_tile = _choose_row_tile(R, Kh, Ow, Kd, Np, budget_bytes=20 * 2**20)

    out = _fused_patch_conv(x4, w3, bias_p, R_tile)        # [R*Ow, Np]
    if Np != N:
        out = out[:, :N]

    # Un-merge back to the original axis ordering with the coarse grid.
    out = out.reshape(
        (m,) + tuple(grid_shape[i] for i in ignore_dims) + (Oh, Ow, N)
    )
    inv_perm = [0] * len(perm)
    for new_pos, old_pos in enumerate(perm):
        inv_perm[old_pos] = new_pos
    out = jnp.transpose(out, inv_perm)
    return out


# --------------------------------- Demo -------------------------------------- #
if __name__ == "__main__":
    embed_dim = 32
    input_grid = (16, 16)
    output_grid = (8, 8)
    m = 2

    key = jax.random.PRNGKey(0)
    kx, kw, kb = jax.random.split(key, 3)

    # Deterministic synthetic parameters (PyTorch Conv2d shapes / init scale).
    Kh = input_grid[0] // output_grid[0]
    Kw = input_grid[1] // output_grid[1]
    fan_in = embed_dim * Kh * Kw
    bound = 1.0 / jnp.sqrt(fan_in)
    weight = jax.random.uniform(
        kw, (embed_dim, embed_dim, Kh, Kw), jnp.float32, -bound, bound
    )
    bias = jax.random.uniform(kb, (embed_dim,), jnp.float32, -bound, bound)

    x = jax.random.normal(kx, (m, *input_grid, embed_dim), jnp.float32)

    out = patch_encoder_forward(
        x, weight, bias,
        input_grid=input_grid, output_grid=output_grid, ignore_dims=(),
    )
    out = jax.block_until_ready(out)
    assert out.shape == (m, *output_grid, embed_dim), out.shape

    # Pure-JAX reference: strided conv in NHWC.
    w_hwio = jnp.transpose(weight, (2, 3, 1, 0))  # [Kh, Kw, Cin, Cout]
    ref = lax.conv_general_dilated(
        x, w_hwio, window_strides=(Kh, Kw), padding="VALID",
        dimension_numbers=("NHWC", "HWIO", "NHWC"),
    ) + bias
    assert jnp.allclose(out, ref, atol=1e-4, rtol=1e-4), \
        float(jnp.max(jnp.abs(out - ref)))

    print("KERNEL_OK")
</pallas_src>

<mosaic_0001>
module attributes {stable_mosaic.version = 11 : i64} {
  func.func @_patch_conv_kernel(%arg0: i32, %arg1: memref<8x2x8x64xf32, #tpu.memory_space<vmem>>, %arg2: memref<2x64x128xf32, #tpu.memory_space<vmem>>, %arg3: memref<1x128xf32, #tpu.memory_space<vmem>>, %arg4: memref<64x128xf32, #tpu.memory_space<vmem>>) attributes {dimension_semantics = [#tpu.dimension_semantics<parallel>], iteration_bounds = array<i64: 2>, scalar_prefetch = 0 : i64, scratch_operands = 0 : i64, tpu.core_type = #tpu.core_type<tc>, window_params = [{transform_indices = @transform_0, window_bounds = array<i64: 8, 2, 8, 64>}, {pipeline_mode = #tpu.pipeline_mode<synchronous>, transform_indices = @transform_1, window_bounds = array<i64: 2, 64, 128>}, {pipeline_mode = #tpu.pipeline_mode<synchronous>, transform_indices = @transform_2, window_bounds = array<i64: 1, 128>}, {transform_indices = @transform_3, window_bounds = array<i64: 64, 128>}]} {
    %c0 = arith.constant 0 : index
    %c0_0 = arith.constant 0 : index
    %c0_1 = arith.constant 0 : index
    %c0_2 = arith.constant 0 : index
    %0 = vector.load %arg1[%c0, %c0_0, %c0_1, %c0_2] : memref<8x2x8x64xf32, #tpu.memory_space<vmem>>, vector<8x1x8x64xf32>
    %1 = vector.shape_cast %0 : vector<8x1x8x64xf32> to vector<8x8x64xf32>
    %2 = vector.shape_cast %1 : vector<8x8x64xf32> to vector<64x64xf32>
    %c0_3 = arith.constant 0 : index
    %c0_4 = arith.constant 0 : index
    %c0_5 = arith.constant 0 : index
    %3 = vector.load %arg2[%c0_3, %c0_4, %c0_5] : memref<2x64x128xf32, #tpu.memory_space<vmem>>, vector<1x64x128xf32>
    %4 = vector.shape_cast %3 : vector<1x64x128xf32> to vector<64x128xf32>
    %cst = arith.constant dense<0.000000e+00> : vector<64x128xf32>
    %5 = tpu.matmul %2, %4, %cst {dimension_numbers = #tpu.dot_dimension_numbers<[1], [0], [0], [1], [0, 0, 1, 1], [], []>} : vector<64x64xf32>, vector<64x128xf32>, vector<64x128xf32> -> vector<64x128xf32>
    %c0_6 = arith.constant 0 : index
    %c1 = arith.constant 1 : index
    %c0_7 = arith.constant 0 : index
    %c0_8 = arith.constant 0 : index
    %6 = vector.load %arg1[%c0_6, %c1, %c0_7, %c0_8] : memref<8x2x8x64xf32, #tpu.memory_space<vmem>>, vector<8x1x8x64xf32>
    %7 = vector.shape_cast %6 : vector<8x1x8x64xf32> to vector<8x8x64xf32>
    %8 = vector.shape_cast %7 : vector<8x8x64xf32> to vector<64x64xf32>
    %c1_9 = arith.constant 1 : index
    %c0_10 = arith.constant 0 : index
    %c0_11 = arith.constant 0 : index
    %9 = vector.load %arg2[%c1_9, %c0_10, %c0_11] : memref<2x64x128xf32, #tpu.memory_space<vmem>>, vector<1x64x128xf32>
    %10 = vector.shape_cast %9 : vector<1x64x128xf32> to vector<64x128xf32>
    %cst_12 = arith.constant dense<0.000000e+00> : vector<64x128xf32>
    %11 = tpu.matmul %8, %10, %cst_12 {dimension_numbers = #tpu.dot_dimension_numbers<[1], [0], [0], [1], [0, 0, 1, 1], [], []>} : vector<64x64xf32>, vector<64x128xf32>, vector<64x128xf32> -> vector<64x128xf32>
    %12 = arith.addf %5, %11 : vector<64x128xf32>
    %c0_13 = arith.constant 0 : index
    %c0_14 = arith.constant 0 : index
    %13 = vector.load %arg3[%c0_13, %c0_14] : memref<1x128xf32, #tpu.memory_space<vmem>>, vector<1x128xf32>
    %14 = vector.broadcast %13 : vector<1x128xf32> to vector<64x128xf32>
    %15 = arith.addf %12, %14 : vector<64x128xf32>
    %c0_15 = arith.constant 0 : index
    %c0_16 = arith.constant 0 : index
    %16 = vector.load %arg4[%c0_15, %c0_16] : memref<64x128xf32, #tpu.memory_space<vmem>>, vector<64x128xf32>
    tpu.vector_store %arg4[%c0_15, %c0_16], %15 {strides = array<i32>} : memref<64x128xf32, #tpu.memory_space<vmem>>, vector<64x128xf32>,
    return
  }
  func.func @transform_0(%arg0: i32) -> (i32, i32, i32, i32) {
    %c0_i32 = arith.constant 0 : i32
    %c0_i32_0 = arith.constant 0 : i32
    %c0_i32_1 = arith.constant 0 : i32
    %c0_i32_2 = arith.constant 0 : i32
    return %arg0, %c0_i32, %c0_i32_0, %c0_i32_1 : i32, i32, i32, i32
  }
  func.func @transform_1(%arg0: i32) -> (i32, i32, i32) {
    %c0_i32 = arith.constant 0 : i32
    %c0_i32_0 = arith.constant 0 : i32
    %c0_i32_1 = arith.constant 0 : i32
    %c0_i32_2 = arith.constant 0 : i32
    return %c0_i32, %c0_i32_0, %c0_i32_1 : i32, i32, i32
  }
  func.func @transform_2(%arg0: i32) -> (i32, i32) {
    %c0_i32 = arith.constant 0 : i32
    %c0_i32_0 = arith.constant 0 : i32
    %c0_i32_1 = arith.constant 0 : i32
    return %c0_i32, %c0_i32_0 : i32, i32
  }
  func.func @transform_3(%arg0: i32) -> (i32, i32) {
    %c0_i32 = arith.constant 0 : i32
    %c0_i32_0 = arith.constant 0 : i32
    return %arg0, %c0_i32 : i32, i32
  }
}

</mosaic_0001>

<llo_original>
// kernel: patch_encoder_forward.1
$region0: #{patch_encoder_forward.1}
  #allocation0 [shape = 'u32[]', space=smem, size = 0x4, offset = 0x4, fixed_abs, tag = 'smem constant byte address 0x4 - core index']
  #allocation1 [shape = 'u32[144,128]{1,0:T(1,128)}', space=vmem, size = 0x12000, scoped, tag = 'internal scratch']
  %s0 = inlined_call_operand.vmem [shape: f32[16,2,8,64], index: 0, kind: input, shape index: {}]
  %s1 = inlined_call_operand.vmem [shape: f32[2,64,128], index: 1, kind: input, shape index: {}]
  %s2 = inlined_call_operand.vmem [shape: f32[1,128], index: 2, kind: input, shape index: {}]
  %s3 = inlined_call_operand.hbm [shape: f32[128,128], index: 3, kind: output, shape index: {}]
  %s4 = sld [smem:[#allocation0]]
  $region45: #{patch_encoder_forward.1} parent=0
    _
  %s6 = ssub.s32 1, %s4
  %s7 = scalar_select 0, %s6, %s4
  $region1: #{patch_encoder_forward.1} parent=0
    #allocation2 [shape = 'u8[65536]{0}', space=vmem, size = 0x10000, scoped, tag = 'output window, operand 0']
    #allocation3 [shape = 's32[2]{0}', space=sflag, size = 0x8, scoped, tag = 'scoped memory for patch_encoder_forward.1']
    %8 = vsyncpa [#allocation3], 0
    %s9 = scalar_lea.sflag [#allocation3], 1
    %10 = vsyncpa %s9, 0
    loop: start=0, step=1, limit=4
    $region2: #{patch_encoder_forward.1} parent=1 // loop_pre_header
      _
    $region3: #{patch_encoder_forward.1} parent=1 // loop_header
      %s12 = sphi 0, %s16
      %p13 = scmp.ge.s32.totalorder %s12, 4
      %s22 = sphi 0, %s24
      %s25 = sphi 0, %s22
      %s26 = sphi 0, %s25
      %s42 = sphi 0, %s26
      %s46 = sphi 0, %s46
      %s48 = sphi 0, %s46
      %s49 = sphi 0, %s48
      %s63 = sphi 0, %s49
      %s67 = sphi 0, %s67
      %s69 = sphi 0, %s67
      %s70 = sphi 0, %s69
      %s84 = sphi 0, %s70
      %s90 = sphi 0, %s92
      %s93 = sphi 0, %s90
      %s94 = sphi 0, %s93
      %s110 = sphi 0, %s94
    $region4: #{patch_encoder_forward.1} parent=1 // loop_header_branch
      %15 = sbr.rel (%p13) target = $region8
    $region5: #{patch_encoder_forward.1} parent=1 // loop_body
      %s17 = ssub.s32 %s12, 1
      %s18 = ssub.s32 %s12, 2
      %s19 = sadd.s32 %s12, 1
      %s20 = ssub.s32 %s12, %s19
      %p21 = scmp.eq.s32.totalorder %s20, 0
      %s23 = sadd.s32 %s22, 1
      %s24 = scalar_select %p21, %s22, %s23
      %p27 = pneg %p21
      %p28 = scmp.eq.s32.totalorder %s12, 1
      %p29 = por %p27, %p28
      %p30 = scmp.ne.s32.totalorder %s22, %s25
      %p31 = scmp.eq.s32.totalorder %s12, 0
      %p32 = por %p30, %p31
      %p33 = scmp.ne.s32.totalorder %s22, %s25
      %p34 = scmp.eq.s32.totalorder %s17, 1
      %p35 = por %p33, %p34
      %p36 = scmp.ne.s32.totalorder %s25, %s26
      %p37 = scmp.eq.s32.totalorder %s17, 0
      %p38 = por %p36, %p37
      %p39 = scmp.ne.s32.totalorder %s25, %s26
      %p40 = scmp.eq.s32.totalorder %s18, 1
      %p41 = por %p39, %p40
      %p43 = scmp.ne.s32.totalorder %s26, %s42
      %p44 = scmp.eq.s32.totalorder %s18, 0
      %p45 = por %p43, %p44
      %s47 = sadd.s32 %s46, 1
      %p50 = scmp.eq.s32.totalorder %s12, 1
      %p51 = scmp.ne.s32.totalorder %s46, %s48
      %p52 = scmp.eq.s32.totalorder %s12, 0
      %p53 = por %p51, %p52
      %p54 = scmp.ne.s32.totalorder %s46, %s48
      %p55 = scmp.eq.s32.totalorder %s17, 1
      %p56 = por %p54, %p55
      %p57 = scmp.ne.s32.totalorder %s48, %s49
      %p58 = scmp.eq.s32.totalorder %s17, 0
      %p59 = por %p57, %p58
      %p60 = scmp.ne.s32.totalorder %s48, %s49
      %p61 = scmp.eq.s32.totalorder %s18, 1
      %p62 = por %p60, %p61
      %p64 = scmp.ne.s32.totalorder %s49, %s63
      %p65 = scmp.eq.s32.totalorder %s18, 0
      %p66 = por %p64, %p65
      %s68 = sadd.s32 %s67, 1
      %p71 = scmp.eq.s32.totalorder %s12, 1
      %p72 = scmp.ne.s32.totalorder %s67, %s69
      %p73 = scmp.eq.s32.totalorder %s12, 0
      %p74 = por %p72, %p73
      %p75 = scmp.ne.s32.totalorder %s67, %s69
      %p76 = scmp.eq.s32.totalorder %s17, 1
      %p77 = por %p75, %p76
      %p78 = scmp.ne.s32.totalorder %s69, %s70
      %p79 = scmp.eq.s32.totalorder %s17, 0
      %p80 = por %p78, %p79
      %p81 = scmp.ne.s32.totalorder %s69, %s70
      %p82 = scmp.eq.s32.totalorder %s18, 1
      %p83 = por %p81, %p82
      %p85 = scmp.ne.s32.totalorder %s70, %s84
      %p86 = scmp.eq.s32.totalorder %s18, 0
      %p87 = por %p85, %p86
      %s88 = ssub.s32 %s12, %s19
      %p89 = scmp.eq.s32.totalorder %s88, 0
      %s91 = sadd.s32 %s90, 1
      %s92 = scalar_select %p89, %s90, %s91
      %p95 = pneg %p89
      %p96 = scmp.eq.s32.totalorder %s12, 1
      %p97 = por %p95, %p96
      %p98 = scmp.ne.s32.totalorder %s90, %s93
      %p99 = scmp.eq.s32.totalorder %s12, 0
      %p100 = por %p98, %p99
      %p101 = scmp.ne.s32.totalorder %s90, %s93
      %p102 = scmp.eq.s32.totalorder %s17, 1
      %p103 = por %p101, %p102
      %p104 = scmp.ne.s32.totalorder %s93, %s94
      %p105 = scmp.eq.s32.totalorder %s17, 0
      %p106 = por %p104, %p105
      %p107 = scmp.ne.s32.totalorder %s93, %s94
      %p108 = scmp.eq.s32.totalorder %s18, 1
      %p109 = por %p107, %p108
      %p111 = scmp.ne.s32.totalorder %s94, %s110
      %p112 = scmp.eq.s32.totalorder %s18, 0
      %p113 = por %p111, %p112
      %p114 = scmp.le.s32.totalorder 1, %s12
      %p115 = scmp.lt.s32.totalorder %s12, 3
      %p116 = pnand %p114, %p115
      %p117 = pneg %p116
      // Predicated region
      $region9: #{patch_encoder_forward.1} parent=5 // pred_check
        _
      $region10: #{patch_encoder_forward.1} parent=5 // pred_check_branch
        %119 = sbr.rel (%p116) target = $region12
      $region11: #{patch_encoder_forward.1} parent=5 // pred_region
        %s120 = ssub.s32 %s12, 1
        // Predicated region
        $region13: #{patch_encoder_forward.1} parent=11 // pred_check
          %p121 = pneg %p59
        $region14: #{patch_encoder_forward.1} parent=11 // pred_check_branch
          %123 = sbr.rel (%p121) target = $region16
        $region15: #{patch_encoder_forward.1} parent=11 // pred_region
          _
        $region16: #{patch_encoder_forward.1} parent=11 // pred_fallthru
          _
        // Predicated region
        $region17: #{patch_encoder_forward.1} parent=11 // pred_check
          %p124 = pneg %p80
        $region18: #{patch_encoder_forward.1} parent=11 // pred_check_branch
          %126 = sbr.rel (%p124) target = $region20
        $region19: #{patch_encoder_forward.1} parent=11 // pred_region
          _
        $region20: #{patch_encoder_forward.1} parent=11 // pred_fallthru
          _
      $region12: #{patch_encoder_forward.1} parent=5 // pred_fallthru
        _
      %p127 = scmp.lt.s32.totalorder %s12, 2
      // Predicated region
      $region21: #{patch_encoder_forward.1} parent=5 // pred_check
        %p128 = pneg %p127
      $region22: #{patch_encoder_forward.1} parent=5 // pred_check_branch
        %130 = sbr.rel (%p128) target = $region24
      $region23: #{patch_encoder_forward.1} parent=5 // pred_region
        // Predicated region
        $region25: #{patch_encoder_forward.1} parent=23 // pred_check
          %p131 = pneg %p32
        $region26: #{patch_encoder_forward.1} parent=23 // pred_check_branch
          %133 = sbr.rel (%p131) target = $region28
        $region27: #{patch_encoder_forward.1} parent=23 // pred_region
          %s134 = smul.u32 8, %s12
          %p135 = scmp.lt.s32.totalorder %s134, 15
          %s136 = scalar_select %p135, %s134, 15
          %s137 = smul.addr %s136, 2
          %s138 = smul.addr %s137, 8
          %s139 = scalar_lea.vmem %s0, %s138
          %s140 = smul.u32 8, %s12
        $region28: #{patch_encoder_forward.1} parent=23 // pred_fallthru
          _
      $region24: #{patch_encoder_forward.1} parent=5 // pred_fallthru
        _
      %p141 = scmp.le.s32.totalorder 1, %s12
      %p142 = scmp.lt.s32.totalorder %s12, 3
      %p143 = pnand %p141, %p142
      %p144 = pneg %p143
      // Predicated region
      $region29: #{patch_encoder_forward.1} parent=5 // pred_check
        _
      $region30: #{patch_encoder_forward.1} parent=5 // pred_check_branch
        %146 = sbr.rel (%p143) target = $region32
      $region31: #{patch_encoder_forward.1} parent=5 // pred_region
        %s147 = ssub.s32 %s12, 1
        %s148 = smul.u32 8, %s17
        %p149 = scmp.lt.s32.totalorder %s148, 15
        %s150 = scalar_select %p149, %s148, 15
        %s151 = smul.addr %s150, 2
        %s152 = smul.addr %s151, 8
        %s153 = scalar_lea.vmem %s0, %s152
        %p154 = pneg %p38
        %p155 = pneg %p35
        %p156 = pneg %p59
        %p157 = pneg %p56
        %p158 = pneg %p80
        %p159 = pneg %p77
        %p160 = pneg %p106
        %p161 = pneg %p103
        %s162 = sand.u32 %s93, 1
        %s163 = scalar_lea.sflag [#allocation3], %s162
        %s164 = sand.u32 %s93, 1
        %s165 = smul.addr %s164, 64
        %s166 = scalar_lea.vmem [#allocation2], %s165
        %s167 = smul.u32 8, %s17
        %p168 = scmp.lt.s32.totalorder %s167, 15
        %s169 = scalar_select %p168, %s167, 15
        %s170 = smul.addr %s169, 2
        %s171 = smul.addr %s170, 8
        %s172 = scalar_lea.vmem %s0, %s171
        %s173 = smul.u32 8, %s17
        %s174 = smul.u32 8, %s17
        %v175 = vld [vmem:[%s172] sm:$0xff]
        %v176 = vld [vmem:[%s172 + $0x10] sm:$0xff]
        %v177 = vld [vmem:[%s172 + $0x20] sm:$0xff]
        %v178 = vld [vmem:[%s172 + $0x30] sm:$0xff]
        %v179 = vld [vmem:[%s172 + $0x40] sm:$0xff]
        %v180 = vld [vmem:[%s172 + $0x50] sm:$0xff]
        %v181 = vld [vmem:[%s172 + $0x60] sm:$0xff]
        %v182 = vld [vmem:[%s172 + $0x70] sm:$0xff]
        %v183 = vld [vmem:[%s1] sm:$0xff]
        %v184 = vld [vmem:[%s1 + $0x8] sm:$0xff]
        %v185 = vld [vmem:[%s1 + $0x10] sm:$0xff]
        %v186 = vld [vmem:[%s1 + $0x18] sm:$0xff]
        %v187 = vld [vmem:[%s1 + $0x20] sm:$0xff]
        %v188 = vld [vmem:[%s1 + $0x28] sm:$0xff]
        %v189 = vld [vmem:[%s1 + $0x30] sm:$0xff]
        %v190 = vld [vmem:[%s1 + $0x38] sm:$0xff]
        %s191 = scalar_lea.vmem %s172, 8
        %v192 = vld [vmem:[%s191] sm:$0xff]
        %v193 = vld [vmem:[%s191 + $0x10] sm:$0xff]
        %v194 = vld [vmem:[%s191 + $0x20] sm:$0xff]
        %v195 = vld [vmem:[%s191 + $0x30] sm:$0xff]
        %v196 = vld [vmem:[%s191 + $0x40] sm:$0xff]
        %v197 = vld [vmem:[%s191 + $0x50] sm:$0xff]
        %v198 = vld [vmem:[%s191 + $0x60] sm:$0xff]
        %v199 = vld [vmem:[%s191 + $0x70] sm:$0xff]
        %s200 = scalar_lea.vmem %s1, 64
        %v201 = vld [vmem:[%s200] sm:$0xff]
        %v202 = vld [vmem:[%s200 + $0x8] sm:$0xff]
        %v203 = vld [vmem:[%s200 + $0x10] sm:$0xff]
        %v204 = vld [vmem:[%s200 + $0x18] sm:$0xff]
        %v205 = vld [vmem:[%s200 + $0x20] sm:$0xff]
        %v206 = vld [vmem:[%s200 + $0x28] sm:$0xff]
        %v207 = vld [vmem:[%s200 + $0x30] sm:$0xff]
        %v208 = vld [vmem:[%s200 + $0x38] sm:$0xff]
        %vm209 = vcmask 523264
        %v211 = vsel %vm209, %v192, 0
        %v214 = vsel %vm209, %v193, 0
        %v217 = vsel %vm209, %v194, 0
        %v220 = vsel %vm209, %v195, 0
        %v223 = vsel %vm209, %v196, 0
        %v226 = vsel %vm209, %v197, 0
        %v229 = vsel %vm209, %v198, 0
        %v232 = vsel %vm209, %v199, 0
        %234 = vmatprep.subr.mxu0 0.0
        %235 = vmatpush1.msra.mxu0 %v201
        %236 = vmatprep.subr.mxu0 0.0
        %237 = vmatpush1.msra.mxu0 %v202
        %238 = vmatprep.subr.mxu0 0.0
        %239 = vmatpush1.msra.mxu0 %v203
        %240 = vmatprep.subr.mxu0 0.0
        %241 = vmatpush1.msra.mxu0 %v204
        %242 = vmatprep.subr.mxu0 0.0
        %243 = vmatpush1.msra.mxu0 %v205
        %244 = vmatprep.subr.mxu0 0.0
        %245 = vmatpush1.msra.mxu0 %v206
        %246 = vmatprep.subr.mxu0 0.0
        %247 = vmatpush1.msra.mxu0 %v207
        %248 = vmatprep.subr.mxu0 0.0
        %249 = vmatpush1.msra.mxu0 %v208
        %250 = vmatprep.subr.mxu0 0.0
        %251 = vmatpush1.msra.mxu0 0.0
        %252 = vmatprep.subr.mxu0 0.0
        %253 = vmatpush1.msra.mxu0 0.0
        %254 = vmatprep.subr.mxu0 0.0
        %255 = vmatpush1.msra.mxu0 0.0
        %256 = vmatprep.subr.mxu0 0.0
        %257 = vmatpush1.msra.mxu0 0.0
        %258 = vmatprep.subr.mxu0 0.0
        %259 = vmatpush1.msra.mxu0 0.0
        %260 = vmatprep.subr.mxu0 0.0
        %261 = vmatpush1.msra.mxu0 0.0
        %262 = vmatprep.subr.mxu0 0.0
        %263 = vmatpush1.msra.mxu0 0.0
        %264 = vmatprep.subr.mxu0 0.0
        %265 = vmatpush1.msra.mxu0 0.0
        %266 = vmatprep.subr.mxu0 0.0
        %267 = vmatpush1.msra.mxu0 0.0
        %268 = vmatprep.subr.mxu0 0.0
        %269 = vmatpush1.msra.mxu0 0.0
        %270 = vmatprep.subr.mxu0 0.0
        %271 = vmatpush1.msra.mxu0 0.0
        %272 = vmatprep.subr.mxu0 0.0
        %273 = vmatpush1.msra.mxu0 0.0
        %274 = vmatprep.subr.mxu0 0.0
        %275 = vmatpush1.msra.mxu0 0.0
        %276 = vmatprep.subr.mxu0 0.0
        %277 = vmatpush1.msra.mxu0 0.0
        %278 = vmatprep.subr.mxu0 0.0
        %279 = vmatpush1.msra.mxu0 0.0
        %280 = vmatprep.subr.mxu0 0.0
        %281 = vmatpush1.msra.mxu0 0.0
        %282 = vmatprep.subr.mxu0 0.0
        %283 = vmatpush1.msra.mxu0 0.0
        %284 = vmatprep.subr.mxu0 0.0
        %285 = vmatpush1.msra.mxu0 0.0
        %286 = vmatprep.subr.mxu0 0.0
        %287 = vmatpush1.msra.mxu0 0.0
        %288 = vmatprep.subr.mxu0 0.0
        %289 = vmatpush1.msra.mxu0 0.0
        %290 = vmatprep.subr.mxu0 0.0
        %291 = vmatpush1.msra.mxu0 0.0
        %292 = vmatprep.subr.mxu0 0.0
        %293 = vmatpush1.msra.mxu0 0.0
        %294 = vmatprep.subr.mxu0 0.0
        %295 = vmatpush1.msra.mxu0 0.0
        %296 = vmatprep.subr.mxu0 0.0
        %297 = vmatpush1.msra.mxu0 0.0
        %298 = vmatprep.mubr.f32.mxu0 0.0
        %299 = vmatmul.mubr.f32.gmra.mrb[0].mxu0 %v211
        %v300 = vpop.f32.mrb[0].mxu0
        %v301 = vadd.f32 0.0, %v300
        %v302 = vpop.f32.mrb[0].mxu0
        %303 = vmatprep.mubr.f32.mxu0 0.0
        %304 = vmatmul.mubr.f32.gmra.mrb[0].mxu0 %v214
        %v305 = vpop.f32.mrb[0].mxu0
        %v306 = vadd.f32 0.0, %v305
        %v307 = vpop.f32.mrb[0].mxu0
        %308 = vmatprep.mubr.f32.mxu0 0.0
        %309 = vmatmul.mubr.f32.gmra.mrb[0].mxu0 %v217
        %v310 = vpop.f32.mrb[0].mxu0
        %v311 = vadd.f32 0.0, %v310
        %v312 = vpop.f32.mrb[0].mxu0
        %313 = vmatprep.mubr.f32.mxu0 0.0
        %314 = vmatmul.mubr.f32.gmra.mrb[0].mxu0 %v220
        %v315 = vpop.f32.mrb[0].mxu0
        %v316 = vadd.f32 0.0, %v315
        %v317 = vpop.f32.mrb[0].mxu0
        %318 = vmatprep.mubr.f32.mxu0 0.0
        %319 = vmatmul.mubr.f32.gmra.mrb[0].mxu0 %v223
        %v320 = vpop.f32.mrb[0].mxu0
        %v321 = vadd.f32 0.0, %v320
        %v322 = vpop.f32.mrb[0].mxu0
        %323 = vmatprep.mubr.f32.mxu0 0.0
        %324 = vmatmul.mubr.f32.gmra.mrb[0].mxu0 %v226
        %v325 = vpop.f32.mrb[0].mxu0
        %v326 = vadd.f32 0.0, %v325
        %v327 = vpop.f32.mrb[0].mxu0
        %328 = vmatprep.mubr.f32.mxu0 0.0
        %329 = vmatmul.mubr.f32.gmra.mrb[0].mxu0 %v229
        %v330 = vpop.f32.mrb[0].mxu0
        %v331 = vadd.f32 0.0, %v330
        %v332 = vpop.f32.mrb[0].mxu0
        %333 = vmatprep.mubr.f32.mxu0 0.0
        %334 = vmatmul.mubr.f32.gmra.mrb[0].mxu0 %v232
        %v335 = vpop.f32.mrb[0].mxu0
        %v336 = vadd.f32 0.0, %v335
        %v337 = vpop.f32.mrb[0].mxu0
        %338 = vdwg.mxu0
        %v340 = vsel %vm209, %v175, 0
        %v343 = vsel %vm209, %v176, 0
        %v346 = vsel %vm209, %v177, 0
        %v349 = vsel %vm209, %v178, 0
        %v352 = vsel %vm209, %v179, 0
        %v355 = vsel %vm209, %v180, 0
        %v358 = vsel %vm209, %v181, 0
        %v361 = vsel %vm209, %v182, 0
        %363 = vmatprep.subr.mxu0 0.0
        %364 = vmatpush1.msra.mxu0 %v183
        %365 = vmatprep.subr.mxu0 0.0
        %366 = vmatpush1.msra.mxu0 %v184
        %367 = vmatprep.subr.mxu0 0.0
        %368 = vmatpush1.msra.mxu0 %v185
        %369 = vmatprep.subr.mxu0 0.0
        %370 = vmatpush1.msra.mxu0 %v186
        %371 = vmatprep.subr.mxu0 0.0
        %372 = vmatpush1.msra.mxu0 %v187
        %373 = vmatprep.subr.mxu0 0.0
        %374 = vmatpush1.msra.mxu0 %v188
        %375 = vmatprep.subr.mxu0 0.0
        %376 = vmatpush1.msra.mxu0 %v189
        %377 = vmatprep.subr.mxu0 0.0
        %378 = vmatpush1.msra.mxu0 %v190
        %379 = vmatprep.subr.mxu0 0.0
        %380 = vmatpush1.msra.mxu0 0.0
        %381 = vmatprep.subr.mxu0 0.0
        %382 = vmatpush1.msra.mxu0 0.0
        %383 = vmatprep.subr.mxu0 0.0
        %384 = vmatpush1.msra.mxu0 0.0
        %385 = vmatprep.subr.mxu0 0.0
        %386 = vmatpush1.msra.mxu0 0.0
        %387 = vmatprep.subr.mxu0 0.0
        %388 = vmatpush1.msra.mxu0 0.0
        %389 = vmatprep.subr.mxu0 0.0
        %390 = vmatpush1.msra.mxu0 0.0
        %391 = vmatprep.subr.mxu0 0.0
        %392 = vmatpush1.msra.mxu0 0.0
        %393 = vmatprep.subr.mxu0 0.0
        %394 = vmatpush1.msra.mxu0 0.0
        %395 = vmatprep.subr.mxu0 0.0
        %396 = vmatpush1.msra.mxu0 0.0
        %397 = vmatprep.subr.mxu0 0.0
        %398 = vmatpush1.msra.mxu0 0.0
        %399 = vmatprep.subr.mxu0 0.0
        %400 = vmatpush1.msra.mxu0 0.0
        %401 = vmatprep.subr.mxu0 0.0
        %402 = vmatpush1.msra.mxu0 0.0
        %403 = vmatprep.subr.mxu0 0.0
        %404 = vmatpush1.msra.mxu0 0.0
        %405 = vmatprep.subr.mxu0 0.0
        %406 = vmatpush1.msra.mxu0 0.0
        %407 = vmatprep.subr.mxu0 0.0
        %408 = vmatpush1.msra.mxu0 0.0
        %409 = vmatprep.subr.mxu0 0.0
        %410 = vmatpush1.msra.mxu0 0.0
        %411 = vmatprep.subr.mxu0 0.0
        %412 = vmatpush1.msra.mxu0 0.0
        %413 = vmatprep.subr.mxu0 0.0
        %414 = vmatpush1.msra.mxu0 0.0
        %415 = vmatprep.subr.mxu0 0.0
        %416 = vmatpush1.msra.mxu0 0.0
        %417 = vmatprep.subr.mxu0 0.0
        %418 = vmatpush1.msra.mxu0 0.0
        %419 = vmatprep.subr.mxu0 0.0
        %420 = vmatpush1.msra.mxu0 0.0
        %421 = vmatprep.subr.mxu0 0.0
        %422 = vmatpush1.msra.mxu0 0.0
        %423 = vmatprep.subr.mxu0 0.0
        %424 = vmatpush1.msra.mxu0 0.0
        %425 = vmatprep.subr.mxu0 0.0
        %426 = vmatpush1.msra.mxu0 0.0
        %427 = vmatprep.mubr.f32.mxu0 0.0
        %428 = vmatmul.mubr.f32.gmra.mrb[0].mxu0 %v340
        %v429 = vpop.f32.mrb[0].mxu0
        %v430 = vadd.f32 %v301, %v429
        %v431 = vpop.f32.mrb[0].mxu0
        %432 = vmatprep.mubr.f32.mxu0 0.0
        %433 = vmatmul.mubr.f32.gmra.mrb[0].mxu0 %v343
        %v434 = vpop.f32.mrb[0].mxu0
        %v435 = vadd.f32 %v306, %v434
        %v436 = vpop.f32.mrb[0].mxu0
        %437 = vmatprep.mubr.f32.mxu0 0.0
        %438 = vmatmul.mubr.f32.gmra.mrb[0].mxu0 %v346
        %v439 = vpop.f32.mrb[0].mxu0
        %v440 = vadd.f32 %v311, %v439
        %v441 = vpop.f32.mrb[0].mxu0
        %442 = vmatprep.mubr.f32.mxu0 0.0
        %443 = vmatmul.mubr.f32.gmra.mrb[0].mxu0 %v349
        %v444 = vpop.f32.mrb[0].mxu0
        %v445 = vadd.f32 %v316, %v444
        %v446 = vpop.f32.mrb[0].mxu0
        %447 = vmatprep.mubr.f32.mxu0 0.0
        %448 = vmatmul.mubr.f32.gmra.mrb[0].mxu0 %v352
        %v449 = vpop.f32.mrb[0].mxu0
        %v450 = vadd.f32 %v321, %v449
        %v451 = vpop.f32.mrb[0].mxu0
        %452 = vmatprep.mubr.f32.mxu0 0.0
        %453 = vmatmul.mubr.f32.gmra.mrb[0].mxu0 %v355
        %v454 = vpop.f32.mrb[0].mxu0
        %v455 = vadd.f32 %v326, %v454
        %v456 = vpop.f32.mrb[0].mxu0
        %457 = vmatprep.mubr.f32.mxu0 0.0
        %458 = vmatmul.mubr.f32.gmra.mrb[0].mxu0 %v358
        %v459 = vpop.f32.mrb[0].mxu0
        %v460 = vadd.f32 %v331, %v459
        %v461 = vpop.f32.mrb[0].mxu0
        %462 = vmatprep.mubr.f32.mxu0 0.0
        %463 = vmatmul.mubr.f32.gmra.mrb[0].mxu0 %v361
        %v464 = vpop.f32.mrb[0].mxu0
        %v465 = vadd.f32 %v336, %v464
        %v466 = vpop.f32.mrb[0].mxu0
        %467 = vdwg.mxu0
        %v468 = vld [vmem:[%s2] sm:$0x1]
        %v470 = vlaneseq
        %v471 = vshrl.u32 %v470, 7
        %v472 = vsub.s32 0, %v471
        %v473 = vrot.slane %v468, %v472
        %v475 = vadd.f32 %v430, %v473
        %v476 = vadd.f32 %v435, %v473
        %v477 = vadd.f32 %v440, %v473
        %v478 = vadd.f32 %v445, %v473
        %v479 = vadd.f32 %v450, %v473
        %v480 = vadd.f32 %v455, %v473
        %v481 = vadd.f32 %v460, %v473
        %v482 = vadd.f32 %v465, %v473
        %483 = vst [vmem:[%s166] sm:$0xff] %v475
        %484 = vst [vmem:[%s166 + $0x8] sm:$0xff] %v476
        %485 = vst [vmem:[%s166 + $0x10] sm:$0xff] %v477
        %486 = vst [vmem:[%s166 + $0x18] sm:$0xff] %v478
        %487 = vst [vmem:[%s166 + $0x20] sm:$0xff] %v479
        %488 = vst [vmem:[%s166 + $0x28] sm:$0xff] %v480
        %489 = vst [vmem:[%s166 + $0x30] sm:$0xff] %v481
        %490 = vst [vmem:[%s166 + $0x38] sm:$0xff] %v482
        %s491 = sand.u32 %s93, 1
        %s492 = scalar_lea.sflag [#allocation3], %s491
        %s493 = sand.u32 %s93, 1
        %s494 = smul.addr %s493, 64
        %s495 = scalar_lea.vmem [#allocation2], %s494
        // Predicated region
        $region33: #{patch_encoder_forward.1} parent=31 // pred_check
          %p496 = pneg %p103
        $region34: #{patch_encoder_forward.1} parent=31 // pred_check_branch
          %498 = sbr.rel (%p496) target = $region36
        $region35: #{patch_encoder_forward.1} parent=31 // pred_region
          %s499 = smul.u32 8, %s17
          %s501 = ssub.s32 1024, 1024
          %502 = vsyncadd %s492, %s501
          %s503 = smul.addr %s499, 128
          %s504 = scalar_lea.hbm %s3, %s503
          %s505 = sshll.u32 %s495, 4
          %s506 = int_to_ptr.vmem [resolvable:$true] %s505
          %511 = dma.vmem_to_hbm [thread:$0]  %s506, 1024, %s504, %s492, 128, 128, 8
        $region36: #{patch_encoder_forward.1} parent=31 // pred_fallthru
          _
      $region32: #{patch_encoder_forward.1} parent=5 // pred_fallthru
        _
      %p512 = scmp.le.s32.totalorder 2, %s12
      // Predicated region
      $region37: #{patch_encoder_forward.1} parent=5 // pred_check
        %p513 = pneg %p512
      $region38: #{patch_encoder_forward.1} parent=5 // pred_check_branch
        %515 = sbr.rel (%p513) target = $region40
      $region39: #{patch_encoder_forward.1} parent=5 // pred_region
        %s516 = ssub.s32 %s12, 2
        // Predicated region
        $region41: #{patch_encoder_forward.1} parent=39 // pred_check
          %p517 = pneg %p109
        $region42: #{patch_encoder_forward.1} parent=39 // pred_check_branch
          %519 = sbr.rel (%p517) target = $region44
        $region43: #{patch_encoder_forward.1} parent=39 // pred_region
          %s520 = sand.u32 %s94, 1
          %s521 = scalar_lea.sflag [#allocation3], %s520
          %s522 = sand.u32 %s94, 1
          %s523 = smul.addr %s522, 64
          %s524 = scalar_lea.vmem [#allocation2], %s523
          %525 = dma.done %s521, 1024
        $region44: #{patch_encoder_forward.1} parent=39 // pred_fallthru
          _
      $region40: #{patch_encoder_forward.1} parent=5 // pred_fallthru
        _
    $region6: #{patch_encoder_forward.1} parent=1 // loop_footer
      %s16 = sadd.s32 1, %s12
    $region7: #{patch_encoder_forward.1} parent=1 // loop_footer_branch
      %11 = sbr.rel target = $region3
    $region8: #{patch_encoder_forward.1} parent=1 // loop_exit
      _
    %526 = vsyncpa [#allocation3], 1
    %s527 = scalar_lea.sflag [#allocation3], 1
    %528 = vsyncpa %s527, 1

</llo_original>
